<compile_context>
chip_gen: v7x
topology: tpu7x:2x2x1
jax: 0.10.0
libtpu: 0.0.40
codegen_flags: <defaults>
</compile_context>

<pallas_src>
import functools

import jax
import jax.numpy as jnp
from jax.experimental import pallas as pl
from jax.experimental.pallas import tpu as pltpu

_LANE = 128
_SUBLANE = 8


def _predict_kernel(x_ref, w1_ref, b1_ref, w2_ref, b2_ref, o_ref, *,
                    matmul_dtype):
    """out_row = relu(x @ W1 + b1) . w2 + b2 for one (block_m, D) batch tile."""
    x = x_ref[...]                                            # (bm, D)
    w1 = w1_ref[...]                                          # (D, 8)
    if matmul_dtype is not None and jnp.dtype(matmul_dtype) != x.dtype:
        # bf16 operands, f32 accumulate: fewer MXU passes at small D
        # (v6e/v7x); enabled via matmul_dtype=jnp.bfloat16.
        x = x.astype(matmul_dtype)
        w1 = w1.astype(matmul_dtype)
    h = jnp.dot(x, w1, preferred_element_type=jnp.float32)    # (bm, 8)  MXU
    h = jnp.maximum(h + b1_ref[...], 0.0)                     # bias+ReLU VPU
    # TODO(synk): Dropout(drop_ratio) with drop_ratio > 0 would use
    # pltpu.prng_seed + pltpu.stateful_bernoulli; drop_ratio=0 is identity.
    # Second projection (bm,8)@(8,1): VPU multiply + 8-lane XLU reduce (the
    # MXU would be ~0% utilized here and is already the binding slot at
    # small D, while the XLU slot is otherwise idle -> hides under MXU/DMA).
    row = jnp.sum(h * w2_ref[...], axis=-1) + b2_ref[0, 0]    # (bm,)
    # Lane-dense store: one (1, bm) row per grid step -> unmasked vst and a
    # 512 B-granule writeback DMA (vs 4 B granules for a (bm,1) block).
    o_ref[...] = row.reshape(1, -1).astype(o_ref.dtype)


def _round_up(x, m):
    return (x + m - 1) // m * m


def _choose_block_m(n, d, *, target_bytes=1 << 20, vmem_budget=40 << 20,
                    max_bm=16384):
    """Pick batch-tile rows per grid step.

    Targets ~1 MiB of x HBM bytes per step so the DMA dominates the ~0.35 us
    fixed per-step overhead, clamps by a VMEM budget that accounts for lane
    padding of the x tile and the (bm, 8)->(bm, 128) hidden temp, keeps >= 2
    grid steps when the batch allows (v7x has 2 TensorCores), and rounds to
    128 rows (full (8,128) vregs + lane-dense output row).
    """
    if n < _LANE:
        return _round_up(max(n, 1), _SUBLANE)      # tiny batch: one small tile

    lane_d = _round_up(d, _LANE)                   # lane-padded x width in VMEM
    bm = _round_up(max(target_bytes // (4 * d), _LANE), _LANE)
    bm = min(bm, max_bm)

    def vmem_bytes(b):
        x_tiles = 2 * b * lane_d * 4               # double-buffered x tiles
        h_tmps = 2 * b * _LANE * 4                 # (bm,8) temps pad to 128 lanes
        out_rows = 2 * _SUBLANE * b * 4            # (1,bm) out rows, 2 buffers
        return x_tiles + h_tmps + out_rows

    while bm > _LANE and vmem_bytes(bm) > vmem_budget:
        bm -= _LANE
    while bm > _SUBLANE and vmem_bytes(bm) > vmem_budget:
        bm -= _SUBLANE

    n128 = _round_up(n, _LANE)
    if n128 >= 2 * _LANE:
        # Keep at least 2 grid steps so "parallel" can shard across 2 TCs.
        bm = min(bm, _round_up(n128 // 2, _LANE))
    return min(bm, n128)


@functools.partial(jax.jit, static_argnames=("block_m", "matmul_dtype"))
def predict_layer(x, w1, b1, w2, b2, *, block_m=None, matmul_dtype=None):
    """x: (N, D) f32.  Returns (N, 1) f32, matching PredictLayer.forward."""
    n, d = x.shape
    if block_m is None:
        bm = _choose_block_m(n, d)
    else:
        bm = _round_up(min(block_m, _round_up(n, _SUBLANE)), _SUBLANE)

    n_pad = _round_up(n, bm)
    if n_pad != n:
        x = jnp.pad(x, ((0, n_pad - n), (0, 0)))
    num_blocks = n_pad // bm

    w2_row = w2.reshape(1, 8)      # (8, 1) -> (1, 8) for broadcast multiply
    b2_s = b2.reshape(1, 1)        # scalar, goes to SMEM

    kernel = functools.partial(_predict_kernel, matmul_dtype=matmul_dtype)

    out = pl.pallas_call(
        kernel,
        out_shape=jax.ShapeDtypeStruct((num_blocks, bm), x.dtype),
        grid_spec=pltpu.PrefetchScalarGridSpec(
            num_scalar_prefetch=0,
            grid=(num_blocks,),
            in_specs=[
                # x tile: default double-buffering; bump to pl.Buffered(3) only
                # if a trace shows exposed DMA waits (costs extra VMEM on v7x).
                pl.BlockSpec((bm, d), lambda i: (i, 0)),
                pl.BlockSpec((d, 8), lambda i: (0, 0)),             # W1 (pinned)
                pl.BlockSpec((1, 8), lambda i: (0, 0)),             # b1 (pinned)
                pl.BlockSpec((1, 8), lambda i: (0, 0)),             # W2 row (pinned)
                pl.BlockSpec(memory_space=pltpu.MemorySpace.SMEM),  # b2 scalar
            ],
            out_specs=pl.BlockSpec((1, bm), lambda i: (i, 0)),      # lane-dense
        ),
        compiler_params=pltpu.CompilerParams(
            # Batch axis is independent -> shards across the 2 TCs on v7x.
            dimension_semantics=("parallel",),
            # Above the 16/32 MiB scoped defaults (v5e/v6e), below v7x's
            # 64 MiB physical VMEM; tile chooser budgets 40 MiB against this.
            vmem_limit_bytes=48 * 1024 * 1024,
        ),
        cost_estimate=pl.CostEstimate(
            flops=2 * n_pad * d * 8 + 2 * n_pad * 8,
            transcendentals=0,
            bytes_accessed=4 * (n_pad * d + n_pad + d * 8 + 8 + 8 + 1),
        ),
    )(x, w1, b1, w2_row, b2_s)

    # (num_blocks, bm) row-major == original row order; back to (N, 1).
    return out.reshape(n_pad, 1)[:n]


def init_params(key, embedding_dim):
    """Deterministic synthetic init mirroring the PyTorch module's shapes.

    nn.Linear weights use init.normal_(mean=0, std=1); biases use the PyTorch
    default uniform(-1/sqrt(fan_in), 1/sqrt(fan_in)). Weights are stored
    transposed: (in_features, out_features).
    """
    k1, k2, k3, k4 = jax.random.split(key, 4)
    w1 = jax.random.normal(k1, (embedding_dim, 8), dtype=jnp.float32)
    bound1 = 1.0 / jnp.sqrt(embedding_dim)
    b1 = jax.random.uniform(k2, (1, 8), minval=-bound1, maxval=bound1,
                            dtype=jnp.float32)
    w2 = jax.random.normal(k3, (8, 1), dtype=jnp.float32)
    bound2 = 1.0 / jnp.sqrt(8.0)
    b2 = jax.random.uniform(k4, (1, 1), minval=-bound2, maxval=bound2,
                            dtype=jnp.float32)
    return w1, b1, w2, b2


def reference(x, w1, b1, w2, b2):
    h = jnp.maximum(x @ w1 + b1, 0.0)
    return h @ w2 + b2


if __name__ == "__main__":
    embedding_dim = 32
    batch = 16

    key = jax.random.PRNGKey(0)
    kx, kp = jax.random.split(key)
    w1, b1, w2, b2 = init_params(kp, embedding_dim)

    # 1) Small batch (single tiny tile), f32 path, tight tolerance.
    x = jax.random.normal(kx, (batch, embedding_dim), dtype=jnp.float32)
    out = jax.block_until_ready(predict_layer(x, w1, b1, w2, b2))
    ref = reference(x, w1, b1, w2, b2)
    assert out.shape == (batch, 1), out.shape
    assert jnp.allclose(out, ref, atol=1e-4, rtol=1e-4), (
        f"max err {jnp.max(jnp.abs(out - ref))}"
    )

    # 2) Ragged multi-block batch: adaptive tiling picks bm=2048 (128-aligned,
    #    2 grid steps, 96 padded rows) and lane-dense (1, 2048) output tiles.
    x2 = jax.random.normal(jax.random.PRNGKey(1), (4000, embedding_dim),
                           dtype=jnp.float32)
    out2 = jax.block_until_ready(predict_layer(x2, w1, b1, w2, b2))
    ref2 = reference(x2, w1, b1, w2, b2)
    assert out2.shape == (4000, 1), out2.shape
    assert jnp.allclose(out2, ref2, atol=1e-3, rtol=1e-3), (
        f"max err {jnp.max(jnp.abs(out2 - ref2))}"
    )

    # 3) bf16-matmul fast path (f32 accumulate): fewer MXU passes where the
    #    first projection binds at small D (v6e/v7x).  bf16 operands carry
    #    ~2^-9 relative error, so compare loosely against the f32 reference.
    out3 = jax.block_until_ready(
        predict_layer(x2, w1, b1, w2, b2, matmul_dtype=jnp.bfloat16))
    assert out3.shape == (4000, 1), out3.shape
    assert jnp.allclose(out3, ref2, atol=0.5, rtol=0.05), (
        f"max err {jnp.max(jnp.abs(out3 - ref2))}"
    )

    print("KERNEL_OK")
</pallas_src>

<mosaic_0001>
module attributes {stable_mosaic.version = 11 : i64} {
  func.func @_predict_kernel(%arg0: i32, %arg1: memref<16x32xf32, #tpu.memory_space<vmem>>, %arg2: memref<32x8xf32, #tpu.memory_space<vmem>>, %arg3: memref<1x8xf32, #tpu.memory_space<vmem>>, %arg4: memref<1x8xf32, #tpu.memory_space<vmem>>, %arg5: memref<1x1xf32, #tpu.memory_space<smem>>, %arg6: memref<1x16xf32, #tpu.memory_space<vmem>>) attributes {dimension_semantics = [#tpu.dimension_semantics<parallel>], iteration_bounds = array<i64: 1>, scalar_prefetch = 0 : i64, scratch_operands = 0 : i64, tpu.core_type = #tpu.core_type<tc>, window_params = [{transform_indices = @transform_0, window_bounds = array<i64: 16, 32>}, {pipeline_mode = #tpu.pipeline_mode<synchronous>, transform_indices = @transform_1, window_bounds = array<i64: 32, 8>}, {pipeline_mode = #tpu.pipeline_mode<synchronous>, transform_indices = @transform_2, window_bounds = array<i64: 1, 8>}, {pipeline_mode = #tpu.pipeline_mode<synchronous>, transform_indices = @transform_3, window_bounds = array<i64: 1, 8>}, {transform_indices = @transform_4, window_bounds = array<i64: 1, 1>}, {transform_indices = @transform_5, window_bounds = array<i64: 1, 16>}]} {
    %c0 = arith.constant 0 : index
    %c0_0 = arith.constant 0 : index
    %0 = vector.load %arg1[%c0, %c0_0] : memref<16x32xf32, #tpu.memory_space<vmem>>, vector<16x32xf32>
    %c0_1 = arith.constant 0 : index
    %c0_2 = arith.constant 0 : index
    %1 = vector.load %arg2[%c0_1, %c0_2] : memref<32x8xf32, #tpu.memory_space<vmem>>, vector<32x8xf32>
    %cst = arith.constant dense<0.000000e+00> : vector<16x8xf32>
    %2 = tpu.matmul %0, %1, %cst {dimension_numbers = #tpu.dot_dimension_numbers<[1], [0], [0], [1], [0, 0, 1, 1], [], []>} : vector<16x32xf32>, vector<32x8xf32>, vector<16x8xf32> -> vector<16x8xf32>
    %c0_3 = arith.constant 0 : index
    %c0_4 = arith.constant 0 : index
    %3 = vector.load %arg3[%c0_3, %c0_4] : memref<1x8xf32, #tpu.memory_space<vmem>>, vector<1x8xf32>
    %4 = vector.broadcast %3 : vector<1x8xf32> to vector<16x8xf32>
    %5 = arith.addf %2, %4 : vector<16x8xf32>
    %cst_5 = arith.constant 0.000000e+00 : f32
    %6 = vector.broadcast %cst_5 : f32 to vector<16x8xf32>
    %7 = arith.maximumf %5, %6 : vector<16x8xf32>
    %c0_6 = arith.constant 0 : index
    %c0_7 = arith.constant 0 : index
    %8 = vector.load %arg4[%c0_6, %c0_7] : memref<1x8xf32, #tpu.memory_space<vmem>>, vector<1x8xf32>
    %9 = vector.broadcast %8 : vector<1x8xf32> to vector<16x8xf32>
    %10 = arith.mulf %7, %9 : vector<16x8xf32>
    %cst_8 = arith.constant dense<0.000000e+00> : vector<16xf32>
    %11 = vector.multi_reduction <add>, %10, %cst_8 [1] : vector<16x8xf32> to vector<16xf32>
    %c0_9 = arith.constant 0 : index
    %c0_10 = arith.constant 0 : index
    %12 = memref.load %arg5[%c0_9, %c0_10] : memref<1x1xf32, #tpu.memory_space<smem>>
    %13 = vector.broadcast %12 : f32 to vector<16xf32>
    %14 = arith.addf %11, %13 : vector<16xf32>
    %15 = vector.shape_cast %14 : vector<16xf32> to vector<1x16xf32>
    %c0_11 = arith.constant 0 : index
    %c0_12 = arith.constant 0 : index
    %16 = vector.load %arg6[%c0_11, %c0_12] : memref<1x16xf32, #tpu.memory_space<vmem>>, vector<1x16xf32>
    tpu.vector_store %arg6[%c0_11, %c0_12], %15 {strides = array<i32>} : memref<1x16xf32, #tpu.memory_space<vmem>>, vector<1x16xf32>,
    return
  }
  func.func @transform_0(%arg0: i32) -> (i32, i32) {
    %c0_i32 = arith.constant 0 : i32
    %c0_i32_0 = arith.constant 0 : i32
    return %arg0, %c0_i32 : i32, i32
  }
  func.func @transform_1(%arg0: i32) -> (i32, i32) {
    %c0_i32 = arith.constant 0 : i32
    %c0_i32_0 = arith.constant 0 : i32
    %c0_i32_1 = arith.constant 0 : i32
    return %c0_i32, %c0_i32_0 : i32, i32
  }
  func.func @transform_2(%arg0: i32) -> (i32, i32) {
    %c0_i32 = arith.constant 0 : i32
    %c0_i32_0 = arith.constant 0 : i32
    %c0_i32_1 = arith.constant 0 : i32
    return %c0_i32, %c0_i32_0 : i32, i32
  }
  func.func @transform_3(%arg0: i32) -> (i32, i32) {
    %c0_i32 = arith.constant 0 : i32
    %c0_i32_0 = arith.constant 0 : i32
    %c0_i32_1 = arith.constant 0 : i32
    return %c0_i32, %c0_i32_0 : i32, i32
  }
  func.func @transform_4(%arg0: i32) -> (i32, i32) {
    %c0_i32 = arith.constant 0 : i32
    %c0_i32_0 = arith.constant 0 : i32
    %c0_i32_1 = arith.constant 0 : i32
    return %c0_i32, %c0_i32_0 : i32, i32
  }
  func.func @transform_5(%arg0: i32) -> (i32, i32) {
    %c0_i32 = arith.constant 0 : i32
    %c0_i32_0 = arith.constant 0 : i32
    return %arg0, %c0_i32 : i32, i32
  }
}

</mosaic_0001>

<llo_original>
// kernel: predict_layer.1
$region0: #{predict_layer.1}
  #allocation0 [shape = 'u32[]', space=smem, size = 0x4, offset = 0x4, fixed_abs, tag = 'smem constant byte address 0x4 - core index']
  #allocation1 [shape = 'u32[144,128]{1,0:T(1,128)}', space=vmem, size = 0x12000, scoped, tag = 'internal scratch']
  #allocation2 [shape = 'f32[1,1]{1,0:T(1,128)S(6)}', space=smem, size = 0x200, scoped, tag = 'scoped memory for predict_layer.1']
  %s0 = inlined_call_operand.vmem [shape: f32[16,32], index: 0, kind: input, shape index: {}]
  %s1 = inlined_call_operand.vmem [shape: f32[32,8], index: 1, kind: input, shape index: {}]
  %s2 = inlined_call_operand.vmem [shape: f32[1,8], index: 2, kind: input, shape index: {}]
  %s3 = inlined_call_operand.vmem [shape: f32[1,8], index: 3, kind: input, shape index: {}]
  %s4 = inlined_call_operand.<no memory space> [shape: f32[1,1], index: 4, kind: input, shape index: {}]
  %s5 = inlined_call_operand.hbm [shape: f32[1,16], index: 5, kind: output, shape index: {}]
  %s6 = sld [smem:[#allocation0]]
  $region30: #{predict_layer.1} parent=0
    _
  %s8 = ssub.s32 1, %s6
  %s9 = scalar_select 0, %s8, %s6
  %10 = sst [smem:[#allocation2]] %s4
  $region1: #{predict_layer.1} parent=0
    #allocation3 [shape = 'u8[512]{0}', space=vmem, size = 0x400, scoped, tag = 'output window, operand 0, single buffered']
    #allocation4 [shape = 's32[1]{0}', space=sflag, size = 0x4, scoped, tag = 'scoped memory for predict_layer.1']
    %11 = vsyncpa [#allocation4], 0
    // Predicated region
    $region2: #{predict_layer.1} parent=1 // pred_check
      _
    $region3: #{predict_layer.1} parent=1 // pred_check_branch
      %13 = sbr.rel (0) target = $region5
    $region4: #{predict_layer.1} parent=1 // pred_region
      _
    $region5: #{predict_layer.1} parent=1 // pred_fallthru
      _
    // Predicated region
    $region6: #{predict_layer.1} parent=1 // pred_check
      _
    $region7: #{predict_layer.1} parent=1 // pred_check_branch
      %15 = sbr.rel (0) target = $region9
    $region8: #{predict_layer.1} parent=1 // pred_region
      _
    $region9: #{predict_layer.1} parent=1 // pred_fallthru
      _
    // Predicated region
    $region10: #{predict_layer.1} parent=1 // pred_check
      _
    $region11: #{predict_layer.1} parent=1 // pred_check_branch
      %17 = sbr.rel (0) target = $region13
    $region12: #{predict_layer.1} parent=1 // pred_region
      _
    $region13: #{predict_layer.1} parent=1 // pred_fallthru
      _
    // Predicated region
    $region14: #{predict_layer.1} parent=1 // pred_check
      _
    $region15: #{predict_layer.1} parent=1 // pred_check_branch
      %19 = sbr.rel (0) target = $region17
    $region16: #{predict_layer.1} parent=1 // pred_region
      _
    $region17: #{predict_layer.1} parent=1 // pred_fallthru
      _
    // Predicated region
    $region18: #{predict_layer.1} parent=1 // pred_check
      _
    $region19: #{predict_layer.1} parent=1 // pred_check_branch
      %21 = sbr.rel (0) target = $region21
    $region20: #{predict_layer.1} parent=1 // pred_region
      _
    $region21: #{predict_layer.1} parent=1 // pred_fallthru
      _
    %v22 = vld [vmem:[%s0] sm:$0xff]
    %v23 = vld [vmem:[%s0 + $0x8] sm:$0xff]
    %v24 = vld [vmem:[%s1] sm:$0xff]
    %v25 = vld [vmem:[%s1 + $0x8] sm:$0xff]
    %v26 = vld [vmem:[%s1 + $0x10] sm:$0xff]
    %v27 = vld [vmem:[%s1 + $0x18] sm:$0xff]
    %v28 = vld [vmem:[%s2] sm:$0x1]
    %v30 = vlaneseq
    %v31 = vshrl.u32 %v30, 7
    %v32 = vsub.s32 0, %v31
    %v33 = vrot.slane %v28, %v32
    %vm35 = vcmask 261120
    %v37 = vsel %vm35, %v22, 0
    %v40 = vsel %vm35, %v23, 0
    %42 = vmatprep.subr.mxu0 0.0
    %43 = vmatpush1.msra.mxu0 %v24
    %44 = vmatprep.subr.mxu0 0.0
    %45 = vmatpush1.msra.mxu0 %v25
    %46 = vmatprep.subr.mxu0 0.0
    %47 = vmatpush1.msra.mxu0 %v26
    %48 = vmatprep.subr.mxu0 0.0
    %49 = vmatpush1.msra.mxu0 %v27
    %50 = vmatprep.subr.mxu0 0.0
    %51 = vmatpush1.msra.mxu0 0.0
    %52 = vmatprep.subr.mxu0 0.0
    %53 = vmatpush1.msra.mxu0 0.0
    %54 = vmatprep.subr.mxu0 0.0
    %55 = vmatpush1.msra.mxu0 0.0
    %56 = vmatprep.subr.mxu0 0.0
    %57 = vmatpush1.msra.mxu0 0.0
    %58 = vmatprep.subr.mxu0 0.0
    %59 = vmatpush1.msra.mxu0 0.0
    %60 = vmatprep.subr.mxu0 0.0
    %61 = vmatpush1.msra.mxu0 0.0
    %62 = vmatprep.subr.mxu0 0.0
    %63 = vmatpush1.msra.mxu0 0.0
    %64 = vmatprep.subr.mxu0 0.0
    %65 = vmatpush1.msra.mxu0 0.0
    %66 = vmatprep.subr.mxu0 0.0
    %67 = vmatpush1.msra.mxu0 0.0
    %68 = vmatprep.subr.mxu0 0.0
    %69 = vmatpush1.msra.mxu0 0.0
    %70 = vmatprep.subr.mxu0 0.0
    %71 = vmatpush1.msra.mxu0 0.0
    %72 = vmatprep.subr.mxu0 0.0
    %73 = vmatpush1.msra.mxu0 0.0
    %74 = vmatprep.subr.mxu0 0.0
    %75 = vmatpush1.msra.mxu0 0.0
    %76 = vmatprep.subr.mxu0 0.0
    %77 = vmatpush1.msra.mxu0 0.0
    %78 = vmatprep.subr.mxu0 0.0
    %79 = vmatpush1.msra.mxu0 0.0
    %80 = vmatprep.subr.mxu0 0.0
    %81 = vmatpush1.msra.mxu0 0.0
    %82 = vmatprep.subr.mxu0 0.0
    %83 = vmatpush1.msra.mxu0 0.0
    %84 = vmatprep.subr.mxu0 0.0
    %85 = vmatpush1.msra.mxu0 0.0
    %86 = vmatprep.subr.mxu0 0.0
    %87 = vmatpush1.msra.mxu0 0.0
    %88 = vmatprep.subr.mxu0 0.0
    %89 = vmatpush1.msra.mxu0 0.0
    %90 = vmatprep.subr.mxu0 0.0
    %91 = vmatpush1.msra.mxu0 0.0
    %92 = vmatprep.subr.mxu0 0.0
    %93 = vmatpush1.msra.mxu0 0.0
    %94 = vmatprep.subr.mxu0 0.0
    %95 = vmatpush1.msra.mxu0 0.0
    %96 = vmatprep.subr.mxu0 0.0
    %97 = vmatpush1.msra.mxu0 0.0
    %98 = vmatprep.subr.mxu0 0.0
    %99 = vmatpush1.msra.mxu0 0.0
    %100 = vmatprep.subr.mxu0 0.0
    %101 = vmatpush1.msra.mxu0 0.0
    %102 = vmatprep.subr.mxu0 0.0
    %103 = vmatpush1.msra.mxu0 0.0
    %104 = vmatprep.subr.mxu0 0.0
    %105 = vmatpush1.msra.mxu0 0.0
    %106 = vmatprep.mubr.f32.mxu0 0.0
    %107 = vmatmul.mubr.f32.gmra.mrb[0].mxu0 %v37
    %v108 = vpop.f32.mrb[0].mxu0
    %v109 = vadd.f32 %v33, %v108
    %v110 = vpop.f32.mrb[0].mxu0
    %111 = vmatprep.mubr.f32.mxu0 0.0
    %112 = vmatmul.mubr.f32.gmra.mrb[0].mxu0 %v40
    %v113 = vpop.f32.mrb[0].mxu0
    %v114 = vadd.f32 %v33, %v113
    %v115 = vpop.f32.mrb[0].mxu0
    %116 = vdwg.mxu0
    %v117 = vmax.f32 %v109, 0.0
    %v118 = vmax.f32 %v114, 0.0
    %v119 = vld [vmem:[%s3] sm:$0x1]
    %v121 = vlaneseq
    %v122 = vshrl.u32 %v121, 7
    %v123 = vsub.s32 0, %v122
    %v124 = vrot.slane %v119, %v123
    %v126 = vmul.f32 %v117, %v124
    %v127 = vmul.f32 %v118, %v124
    %vm128 = vcmask 64512
    %v129 = vsel %vm128, %v126, 0.0
    %130 = vadd.xlane.f32.xlu0 %v129
    %v131 = vpop.xlane.xlu0 %130
    %v132 = vsel %vm128, %v127, 0.0
    %133 = vadd.xlane.f32.xlu0 %v132
    %v134 = vpop.xlane.xlu0 %133
    %s135 = sld [smem:[#allocation2]]
    %v136 = vstv %s135
    %v137 = vadd.f32 %v131, %v136
    %v138 = vadd.f32 %v134, %v136
    %v141 = vlaneseq
    %v142 = vand.u32 %v141, 127
    %v143 = vlaneseq
    %v144 = vshrl.u32 %v143, 7
    %v145 = vsub.s32 %v142, %v144
    %v146 = vrot.slane %v137, %v145
    %v147 = vadd.s32 %v142, 4294967288
    %v148 = vlaneseq
    %v149 = vshrl.u32 %v148, 7
    %v150 = vsub.s32 %v147, %v149
    %v151 = vrot.slane %v138, %v150
    %vm152 = vcmask 130112
    %v153 = vsel %vm152, %v151, %v146
    %vm155 = vcmask 122880
    %156 = vst.msk [vmem:[#allocation3] sm:$0x1] %vm155, %v153
    // Predicated region
    $region22: #{predict_layer.1} parent=1 // pred_check
      _
    $region23: #{predict_layer.1} parent=1 // pred_check_branch
      %158 = sbr.rel (0) target = $region25
    $region24: #{predict_layer.1} parent=1 // pred_region
      %s160 = ssub.s32 16, 16
      %161 = vsyncadd [#allocation4], %s160
      %s163 = sshll.u32 [#allocation3], 4
      %s164 = int_to_ptr.vmem [resolvable:$true] %s163
      %166 = dma.vmem_to_hbm [thread:$0]  %s164, 16, %s5, [#allocation4]
    $region25: #{predict_layer.1} parent=1 // pred_fallthru
      _
    // Predicated region
    $region26: #{predict_layer.1} parent=1 // pred_check
      _
    $region27: #{predict_layer.1} parent=1 // pred_check_branch
      %168 = sbr.rel (0) target = $region29
    $region28: #{predict_layer.1} parent=1 // pred_region
      %169 = dma.done [#allocation4], 16
    $region29: #{predict_layer.1} parent=1 // pred_fallthru
      _
    %170 = vsyncpa [#allocation4], 1

</llo_original>
